<compile_context>
chip_gen: v7x
topology: tpu7x:2x2x1
jax: 0.10.0
libtpu: 0.0.40
codegen_flags: <defaults>
</compile_context>

<pallas_src>
import math

import jax
import jax.numpy as jnp
from jax.experimental import pallas as pl
from jax.experimental.pallas import tpu as pltpu


def _round_up(x, m):
    return ((x + m - 1) // m) * m


def _mlp_kernel(x_ref, w1_ref, b1_ref, w2_ref, b2_ref, o_ref):
    # x_ref:  [tb, in_f]  (input dtype; cast to bf16 here, no wrapper pass)
    # w1_ref: [in_f, hid] bf16     b1_ref: [1, hid] f32
    # w2_ref: [hid, out]  bf16     b2_ref: [1, out] f32
    x = x_ref[...].astype(jnp.bfloat16)
    # First matmul on the MXU in bf16, accumulate f32, bias-add f32.
    h = jnp.dot(x, w1_ref[...], preferred_element_type=jnp.float32) + b1_ref[...]
    # SiLU(h) = h * sigmoid(h), kept in f32 (sigmoid runs on the EUP).
    h = h * jax.nn.sigmoid(h)
    # Second matmul: bf16 operands, f32 accumulation.
    y = jnp.dot(h.astype(jnp.bfloat16), w2_ref[...],
                preferred_element_type=jnp.float32) + b2_ref[...]
    o_ref[...] = y.astype(o_ref.dtype)


def _choose_batch_tile(B, in_f, hid, out_f, batch_tile,
                       vmem_budget=40 * 1024 * 1024):
    """Batch tile: multiple of 16 (bf16 sublane tile), >=2 grid steps when the
    batch allows (v7x has 2 TensorCores), clamped to a VMEM budget."""
    if B <= 16:
        return B  # single full-batch block (full-dim blocks are always legal)
    tb = min(_round_up(batch_tile, 16), _round_up(pl.cdiv(B, 2), 16))
    tb = max(tb, 16)
    # Resident weights/biases (single-buffered) + double-buffered x/y tiles
    # + the live f32 intermediate h.
    fixed = (in_f * hid + hid * out_f) * 2 + (hid + out_f) * 4

    def usage(t):
        return fixed + 2 * t * in_f * 4 + 2 * t * out_f * 4 + t * hid * 4

    while tb > 16 and usage(tb) > vmem_budget:
        tb = _round_up(tb // 2, 16)
    return tb


def prepare_params(w1, b1, w2, b2):
    """One-time parameter prep (bf16 MXU operands, f32 row-vector biases).

    Do this once at init, NOT per forward call, so no per-call HBM pass over
    the weights is needed.
    """
    return (w1.astype(jnp.bfloat16),
            b1.reshape(1, -1).astype(jnp.float32),
            w2.astype(jnp.bfloat16),
            b2.reshape(1, -1).astype(jnp.float32))


def condition_mlp(x, w1b, b1r, w2b, b2r, *, batch_tile=512, out_dtype=None):
    """y = SiLU(x @ W1 + b1) @ W2 + b2.

    x: [B, in];  w1b: [in, hidden] bf16;  b1r: [1, hidden] f32;
    w2b: [hidden, out] bf16;  b2r: [1, out] f32  (from prepare_params).
    Weights are stored [in, out] (transpose of PyTorch's nn.Linear [out, in]).
    """
    B, in_f = x.shape
    hid = w1b.shape[1]
    out_f = w2b.shape[1]
    out_dtype = x.dtype if out_dtype is None else out_dtype

    tb = _choose_batch_tile(B, in_f, hid, out_f, batch_tile)
    nb = pl.cdiv(B, tb)

    cost = pl.CostEstimate(
        flops=2 * B * (in_f * hid + hid * out_f),
        transcendentals=B * hid,
        bytes_accessed=(B * in_f * x.dtype.itemsize
                        + (in_f * hid + hid * out_f) * 2
                        + (hid + out_f) * 4
                        + B * out_f * jnp.dtype(out_dtype).itemsize),
    )

    resident = dict(pipeline_mode=pl.Buffered(1))  # constants: single buffer
    return pl.pallas_call(
        _mlp_kernel,
        out_shape=jax.ShapeDtypeStruct((B, out_f), out_dtype),
        grid=(nb,),
        in_specs=[
            # Activations stream per batch tile (partial last tile handled by
            # Pallas masking; garbage rows only produce dropped output rows).
            pl.BlockSpec((tb, in_f), lambda i: (i, 0)),
            # Weights/biases: constant index_map + Buffered(1) -> DMA'd once,
            # VMEM-resident with a single buffer.
            pl.BlockSpec((in_f, hid), lambda i: (0, 0), **resident),
            pl.BlockSpec((1, hid), lambda i: (0, 0), **resident),
            pl.BlockSpec((hid, out_f), lambda i: (0, 0), **resident),
            pl.BlockSpec((1, out_f), lambda i: (0, 0), **resident),
        ],
        out_specs=pl.BlockSpec((tb, out_f), lambda i: (i, 0)),
        compiler_params=pltpu.CompilerParams(
            # Batch tiles are independent -> shard across v7x's 2 TensorCores.
            dimension_semantics=("parallel",),
            # Headroom above the 16/32 MiB scoped defaults, still safe on
            # v7x's 64 MiB physical VMEM.
            vmem_limit_bytes=48 * 1024 * 1024,
        ),
        cost_estimate=cost,
    )(x, w1b, b1r, w2b, b2r)


def init_params(key, in_features, out_features, hidden_dim, dtype=jnp.float32):
    """Deterministic init mirroring nn.Linear defaults (U(-1/sqrt(fan_in), +))."""
    k1, k2, k3, k4 = jax.random.split(key, 4)
    bound1 = 1.0 / math.sqrt(in_features)
    bound2 = 1.0 / math.sqrt(hidden_dim)
    # Stored as [in, out] (transpose of PyTorch's [out, in]).
    w1 = jax.random.uniform(k1, (in_features, hidden_dim), dtype, -bound1, bound1)
    b1 = jax.random.uniform(k2, (hidden_dim,), dtype, -bound1, bound1)
    w2 = jax.random.uniform(k3, (hidden_dim, out_features), dtype, -bound2, bound2)
    b2 = jax.random.uniform(k4, (out_features,), dtype, -bound2, bound2)
    return w1, b1, w2, b2


if __name__ == "__main__":
    in_features, out_features, hidden_dim = 16, 24, 32

    key = jax.random.PRNGKey(0)
    kx1, kx2, kp = jax.random.split(key, 3)
    w1, b1, w2, b2 = init_params(kp, in_features, out_features, hidden_dim)
    params = prepare_params(w1, b1, w2, b2)  # one-time weight cast/reshape

    def ref(x):
        h = x @ w1 + b1
        h = h * jax.nn.sigmoid(h)
        return h @ w2 + b2

    # Small batch: single full-batch block.
    x_small = jax.random.normal(kx1, (8, in_features), jnp.float32)
    y_small = condition_mlp(x_small, *params)
    jax.block_until_ready(y_small)
    assert y_small.shape == (8, out_features)
    assert jnp.allclose(y_small, ref(x_small), atol=2e-2, rtol=2e-2), (
        f"max abs err {jnp.max(jnp.abs(y_small - ref(x_small)))}")

    # Larger batch: exercises the multi-step grid (>=2 steps) and the partial
    # last batch tile (no padding of B in the wrapper).
    x_big = jax.random.normal(kx2, (200, in_features), jnp.float32)
    y_big = condition_mlp(x_big, *params)
    jax.block_until_ready(y_big)
    assert y_big.shape == (200, out_features)
    assert jnp.allclose(y_big, ref(x_big), atol=2e-2, rtol=2e-2), (
        f"max abs err {jnp.max(jnp.abs(y_big - ref(x_big)))}")

    print("KERNEL_OK")
</pallas_src>

<mosaic_0001>
module attributes {stable_mosaic.version = 11 : i64} {
  func.func @_mlp_kernel(%arg0: i32, %arg1: memref<8x16xf32, #tpu.memory_space<vmem>>, %arg2: memref<16x32xbf16, #tpu.memory_space<vmem>>, %arg3: memref<1x32xf32, #tpu.memory_space<vmem>>, %arg4: memref<32x24xbf16, #tpu.memory_space<vmem>>, %arg5: memref<1x24xf32, #tpu.memory_space<vmem>>, %arg6: memref<8x24xf32, #tpu.memory_space<vmem>>) attributes {dimension_semantics = [#tpu.dimension_semantics<parallel>], iteration_bounds = array<i64: 1>, scalar_prefetch = 0 : i64, scratch_operands = 0 : i64, tpu.core_type = #tpu.core_type<tc>, window_params = [{transform_indices = @transform_0, window_bounds = array<i64: 8, 16>}, {pipeline_mode = #tpu.pipeline_mode<synchronous>, transform_indices = @transform_1, window_bounds = array<i64: 16, 32>}, {pipeline_mode = #tpu.pipeline_mode<synchronous>, transform_indices = @transform_2, window_bounds = array<i64: 1, 32>}, {pipeline_mode = #tpu.pipeline_mode<synchronous>, transform_indices = @transform_3, window_bounds = array<i64: 32, 24>}, {pipeline_mode = #tpu.pipeline_mode<synchronous>, transform_indices = @transform_4, window_bounds = array<i64: 1, 24>}, {transform_indices = @transform_5, window_bounds = array<i64: 8, 24>}]} {
    %c0 = arith.constant 0 : index
    %c0_0 = arith.constant 0 : index
    %0 = vector.load %arg1[%c0, %c0_0] : memref<8x16xf32, #tpu.memory_space<vmem>>, vector<8x16xf32>
    %1 = arith.truncf %0 : vector<8x16xf32> to vector<8x16xbf16>
    %c0_1 = arith.constant 0 : index
    %c0_2 = arith.constant 0 : index
    %2 = vector.load %arg2[%c0_1, %c0_2] : memref<16x32xbf16, #tpu.memory_space<vmem>>, vector<16x32xbf16>
    %cst = arith.constant dense<0.000000e+00> : vector<8x32xf32>
    %3 = tpu.matmul %1, %2, %cst {dimension_numbers = #tpu.dot_dimension_numbers<[1], [0], [0], [1], [0, 0, 1, 1], [], []>} : vector<8x16xbf16>, vector<16x32xbf16>, vector<8x32xf32> -> vector<8x32xf32>
    %c0_3 = arith.constant 0 : index
    %c0_4 = arith.constant 0 : index
    %4 = vector.load %arg3[%c0_3, %c0_4] : memref<1x32xf32, #tpu.memory_space<vmem>>, vector<1x32xf32>
    %5 = vector.broadcast %4 : vector<1x32xf32> to vector<8x32xf32>
    %6 = arith.addf %3, %5 : vector<8x32xf32>
    %7 = arith.negf %6 : vector<8x32xf32>
    %8 = math.exp %7 : vector<8x32xf32>
    %cst_5 = arith.constant 1.000000e+00 : f32
    %9 = vector.broadcast %cst_5 : f32 to vector<8x32xf32>
    %10 = arith.addf %9, %8 : vector<8x32xf32>
    %11 = arith.divf %9, %10 : vector<8x32xf32>
    %12 = arith.mulf %6, %11 : vector<8x32xf32>
    %13 = arith.truncf %12 : vector<8x32xf32> to vector<8x32xbf16>
    %c0_6 = arith.constant 0 : index
    %c0_7 = arith.constant 0 : index
    %14 = vector.load %arg4[%c0_6, %c0_7] : memref<32x24xbf16, #tpu.memory_space<vmem>>, vector<32x24xbf16>
    %cst_8 = arith.constant dense<0.000000e+00> : vector<8x24xf32>
    %15 = tpu.matmul %13, %14, %cst_8 {dimension_numbers = #tpu.dot_dimension_numbers<[1], [0], [0], [1], [0, 0, 1, 1], [], []>} : vector<8x32xbf16>, vector<32x24xbf16>, vector<8x24xf32> -> vector<8x24xf32>
    %c0_9 = arith.constant 0 : index
    %c0_10 = arith.constant 0 : index
    %16 = vector.load %arg5[%c0_9, %c0_10] : memref<1x24xf32, #tpu.memory_space<vmem>>, vector<1x24xf32>
    %17 = vector.broadcast %16 : vector<1x24xf32> to vector<8x24xf32>
    %18 = arith.addf %15, %17 : vector<8x24xf32>
    %c0_11 = arith.constant 0 : index
    %c0_12 = arith.constant 0 : index
    %19 = vector.load %arg6[%c0_11, %c0_12] : memref<8x24xf32, #tpu.memory_space<vmem>>, vector<8x24xf32>
    tpu.vector_store %arg6[%c0_11, %c0_12], %18 {strides = array<i32>} : memref<8x24xf32, #tpu.memory_space<vmem>>, vector<8x24xf32>,
    return
  }
  func.func @transform_0(%arg0: i32) -> (i32, i32) {
    %c0_i32 = arith.constant 0 : i32
    %c0_i32_0 = arith.constant 0 : i32
    return %arg0, %c0_i32 : i32, i32
  }
  func.func @transform_1(%arg0: i32) -> (i32, i32) {
    %c0_i32 = arith.constant 0 : i32
    %c0_i32_0 = arith.constant 0 : i32
    %c0_i32_1 = arith.constant 0 : i32
    return %c0_i32, %c0_i32_0 : i32, i32
  }
  func.func @transform_2(%arg0: i32) -> (i32, i32) {
    %c0_i32 = arith.constant 0 : i32
    %c0_i32_0 = arith.constant 0 : i32
    %c0_i32_1 = arith.constant 0 : i32
    return %c0_i32, %c0_i32_0 : i32, i32
  }
  func.func @transform_3(%arg0: i32) -> (i32, i32) {
    %c0_i32 = arith.constant 0 : i32
    %c0_i32_0 = arith.constant 0 : i32
    %c0_i32_1 = arith.constant 0 : i32
    return %c0_i32, %c0_i32_0 : i32, i32
  }
  func.func @transform_4(%arg0: i32) -> (i32, i32) {
    %c0_i32 = arith.constant 0 : i32
    %c0_i32_0 = arith.constant 0 : i32
    %c0_i32_1 = arith.constant 0 : i32
    return %c0_i32, %c0_i32_0 : i32, i32
  }
  func.func @transform_5(%arg0: i32) -> (i32, i32) {
    %c0_i32 = arith.constant 0 : i32
    %c0_i32_0 = arith.constant 0 : i32
    return %arg0, %c0_i32 : i32, i32
  }
}

</mosaic_0001>

<llo_original>
// kernel: tpu_custom_call.1
$region0: #{tpu_custom_call.1}
  #allocation0 [shape = 'u32[]', space=smem, size = 0x4, offset = 0x4, fixed_abs, tag = 'smem constant byte address 0x4 - core index']
  #allocation1 [shape = 'u32[144,128]{1,0:T(1,128)}', space=vmem, size = 0x12000, scoped, tag = 'internal scratch']
  %s0 = inlined_call_operand.vmem [shape: f32[8,16], index: 0, kind: input, shape index: {}]
  %s1 = inlined_call_operand.vmem [shape: bf16[16,32], index: 1, kind: input, shape index: {}]
  %s2 = inlined_call_operand.vmem [shape: f32[1,32], index: 2, kind: input, shape index: {}]
  %s3 = inlined_call_operand.vmem [shape: bf16[32,24], index: 3, kind: input, shape index: {}]
  %s4 = inlined_call_operand.vmem [shape: f32[1,24], index: 4, kind: input, shape index: {}]
  %s5 = inlined_call_operand.hbm [shape: f32[8,24], index: 5, kind: output, shape index: {}]
  %s6 = sld [smem:[#allocation0]]
  $region30: #{tpu_custom_call.1} parent=0
    _
  %s8 = ssub.s32 1, %s6
  %s9 = scalar_select 0, %s8, %s6
  $region1: #{tpu_custom_call.1} parent=0
    #allocation2 [shape = 'u8[4096]{0}', space=vmem, size = 0x1000, scoped, tag = 'output window, operand 0, single buffered']
    #allocation3 [shape = 's32[1]{0}', space=sflag, size = 0x4, scoped, tag = 'scoped memory for tpu_custom_call.1']
    %10 = vsyncpa [#allocation3], 0
    // Predicated region
    $region2: #{tpu_custom_call.1} parent=1 // pred_check
      _
    $region3: #{tpu_custom_call.1} parent=1 // pred_check_branch
      %12 = sbr.rel (0) target = $region5
    $region4: #{tpu_custom_call.1} parent=1 // pred_region
      _
    $region5: #{tpu_custom_call.1} parent=1 // pred_fallthru
      _
    // Predicated region
    $region6: #{tpu_custom_call.1} parent=1 // pred_check
      _
    $region7: #{tpu_custom_call.1} parent=1 // pred_check_branch
      %14 = sbr.rel (0) target = $region9
    $region8: #{tpu_custom_call.1} parent=1 // pred_region
      _
    $region9: #{tpu_custom_call.1} parent=1 // pred_fallthru
      _
    // Predicated region
    $region10: #{tpu_custom_call.1} parent=1 // pred_check
      _
    $region11: #{tpu_custom_call.1} parent=1 // pred_check_branch
      %16 = sbr.rel (0) target = $region13
    $region12: #{tpu_custom_call.1} parent=1 // pred_region
      _
    $region13: #{tpu_custom_call.1} parent=1 // pred_fallthru
      _
    // Predicated region
    $region14: #{tpu_custom_call.1} parent=1 // pred_check
      _
    $region15: #{tpu_custom_call.1} parent=1 // pred_check_branch
      %18 = sbr.rel (0) target = $region17
    $region16: #{tpu_custom_call.1} parent=1 // pred_region
      _
    $region17: #{tpu_custom_call.1} parent=1 // pred_fallthru
      _
    // Predicated region
    $region18: #{tpu_custom_call.1} parent=1 // pred_check
      _
    $region19: #{tpu_custom_call.1} parent=1 // pred_check_branch
      %20 = sbr.rel (0) target = $region21
    $region20: #{tpu_custom_call.1} parent=1 // pred_region
      _
    $region21: #{tpu_custom_call.1} parent=1 // pred_fallthru
      _
    %v22 = vld [vmem:[%s0] sm:$0xff]
    %v23 = vpack.c.bf16 %v22, %v22
    %v24 = vld [vmem:[%s1] sm:$0xf]
    %v25 = vld [vmem:[%s1 + $0x4] sm:$0xf]
    %v26 = vld [vmem:[%s2] sm:$0x1]
    %v28 = vlaneseq
    %v29 = vshrl.u32 %v28, 7
    %v30 = vsub.s32 0, %v29
    %v31 = vrot.slane %v26, %v30
    %v35 = vunpack.c.l.b16 %v24
    %v36 = vunpack.c.l.b16 %v25
    %v37 = vpack.c.b16 %v36, %v35
    %vm39 = vcmask 130048
    %v41 = vsel %vm39, %v23, 0
    %43 = vmatprep.subr.bf16.mxu0 0
    %44 = vmatpush1.bf16.msra.mxu0 %v37
    %45 = vmatprep.subr.bf16.mxu0 0
    %46 = vmatpush1.bf16.msra.mxu0 0
    %47 = vmatprep.subr.bf16.mxu0 0
    %48 = vmatpush1.bf16.msra.mxu0 0
    %49 = vmatprep.subr.bf16.mxu0 0
    %50 = vmatpush1.bf16.msra.mxu0 0
    %51 = vmatprep.subr.bf16.mxu0 0
    %52 = vmatpush1.bf16.msra.mxu0 0
    %53 = vmatprep.subr.bf16.mxu0 0
    %54 = vmatpush1.bf16.msra.mxu0 0
    %55 = vmatprep.subr.bf16.mxu0 0
    %56 = vmatpush1.bf16.msra.mxu0 0
    %57 = vmatprep.subr.bf16.mxu0 0
    %58 = vmatpush1.bf16.msra.mxu0 0
    %59 = vmatprep.subr.bf16.mxu0 0
    %60 = vmatpush1.bf16.msra.mxu0 0
    %61 = vmatprep.subr.bf16.mxu0 0
    %62 = vmatpush1.bf16.msra.mxu0 0
    %63 = vmatprep.subr.bf16.mxu0 0
    %64 = vmatpush1.bf16.msra.mxu0 0
    %65 = vmatprep.subr.bf16.mxu0 0
    %66 = vmatpush1.bf16.msra.mxu0 0
    %67 = vmatprep.subr.bf16.mxu0 0
    %68 = vmatpush1.bf16.msra.mxu0 0
    %69 = vmatprep.subr.bf16.mxu0 0
    %70 = vmatpush1.bf16.msra.mxu0 0
    %71 = vmatprep.subr.bf16.mxu0 0
    %72 = vmatpush1.bf16.msra.mxu0 0
    %73 = vmatprep.subr.bf16.mxu0 0
    %74 = vmatpush1.bf16.msra.mxu0 0
    %75 = vmatprep.mubr.bf16.mxu0 0
    %76 = vmatmul.mubr.bf16.gmra.mrb[0].mxu0 %v41
    %v77 = vpop.f32.mrb[0].mxu0
    %v78 = vadd.f32 %v31, %v77
    %v79 = vpop.f32.mrb[0].mxu0
    %v80 = vpop.f32.mrb[0].mxu0
    %v81 = vpop.f32.mrb[0].mxu0
    %82 = vdwg.mxu0
    %v83 = vxor.u32 %v78, 2147483648
    %v84 = vmul.f32 %v83, 1.442695
    %v85 = vpow.pop %v84
    %v86 = vadd.f32 %v85, 1.0
    %v87 = vrcp.pop %v86
    %v88 = vmul.f32 1.0, %v87
    %v89 = vmul.f32 %v78, %v88
    %v90 = vpack.c.bf16 %v89, %v89
    %v91 = vld [vmem:[%s3] sm:$0xf]
    %v92 = vld [vmem:[%s3 + $0x4] sm:$0xf]
    %v93 = vld [vmem:[%s3 + $0x8] sm:$0xf]
    %v94 = vld [vmem:[%s3 + $0xc] sm:$0xf]
    %v95 = vld [vmem:[%s4] sm:$0x1]
    %v97 = vlaneseq
    %v98 = vshrl.u32 %v97, 7
    %v99 = vsub.s32 0, %v98
    %v100 = vrot.slane %v95, %v99
    %v106 = vunpack.c.l.b16 %v91
    %v107 = vunpack.c.l.b16 %v92
    %v108 = vunpack.c.l.b16 %v93
    %v109 = vunpack.c.l.b16 %v94
    %v110 = vpack.c.b16 %v107, %v106
    %v111 = vpack.c.b16 %v109, %v108
    %vm114 = vcmask 261120
    %v116 = vsel %vm114, %v90, 0
    %118 = vmatprep.subr.bf16.mxu0 0
    %119 = vmatpush1.bf16.msra.mxu0 %v110
    %120 = vmatprep.subr.bf16.mxu0 0
    %121 = vmatpush1.bf16.msra.mxu0 %v111
    %122 = vmatprep.subr.bf16.mxu0 0
    %123 = vmatpush1.bf16.msra.mxu0 0
    %124 = vmatprep.subr.bf16.mxu0 0
    %125 = vmatpush1.bf16.msra.mxu0 0
    %126 = vmatprep.subr.bf16.mxu0 0
    %127 = vmatpush1.bf16.msra.mxu0 0
    %128 = vmatprep.subr.bf16.mxu0 0
    %129 = vmatpush1.bf16.msra.mxu0 0
    %130 = vmatprep.subr.bf16.mxu0 0
    %131 = vmatpush1.bf16.msra.mxu0 0
    %132 = vmatprep.subr.bf16.mxu0 0
    %133 = vmatpush1.bf16.msra.mxu0 0
    %134 = vmatprep.subr.bf16.mxu0 0
    %135 = vmatpush1.bf16.msra.mxu0 0
    %136 = vmatprep.subr.bf16.mxu0 0
    %137 = vmatpush1.bf16.msra.mxu0 0
    %138 = vmatprep.subr.bf16.mxu0 0
    %139 = vmatpush1.bf16.msra.mxu0 0
    %140 = vmatprep.subr.bf16.mxu0 0
    %141 = vmatpush1.bf16.msra.mxu0 0
    %142 = vmatprep.subr.bf16.mxu0 0
    %143 = vmatpush1.bf16.msra.mxu0 0
    %144 = vmatprep.subr.bf16.mxu0 0
    %145 = vmatpush1.bf16.msra.mxu0 0
    %146 = vmatprep.subr.bf16.mxu0 0
    %147 = vmatpush1.bf16.msra.mxu0 0
    %148 = vmatprep.subr.bf16.mxu0 0
    %149 = vmatpush1.bf16.msra.mxu0 0
    %150 = vmatprep.mubr.bf16.mxu0 0
    %151 = vmatmul.mubr.bf16.gmra.mrb[0].mxu0 %v116
    %v152 = vpop.f32.mrb[0].mxu0
    %v153 = vadd.f32 %v100, %v152
    %v154 = vpop.f32.mrb[0].mxu0
    %v155 = vpop.f32.mrb[0].mxu0
    %v156 = vpop.f32.mrb[0].mxu0
    %157 = vdwg.mxu0
    %vm158 = vcmask 195584
    %159 = vst.msk [vmem:[#allocation2] sm:$0xff] %vm158, %v153
    // Predicated region
    $region22: #{tpu_custom_call.1} parent=1 // pred_check
      _
    $region23: #{tpu_custom_call.1} parent=1 // pred_check_branch
      %161 = sbr.rel (0) target = $region25
    $region24: #{tpu_custom_call.1} parent=1 // pred_region
      %s163 = ssub.s32 128, 128
      %164 = vsyncadd [#allocation3], %s163
      %s166 = sshll.u32 [#allocation2], 4
      %s167 = int_to_ptr.vmem [resolvable:$true] %s166
      %169 = dma.vmem_to_hbm [thread:$0]  %s167, 128, %s5, [#allocation3]
    $region25: #{tpu_custom_call.1} parent=1 // pred_fallthru
      _
    // Predicated region
    $region26: #{tpu_custom_call.1} parent=1 // pred_check
      _
    $region27: #{tpu_custom_call.1} parent=1 // pred_check_branch
      %171 = sbr.rel (0) target = $region29
    $region28: #{tpu_custom_call.1} parent=1 // pred_region
      %172 = dma.done [#allocation3], 128
    $region29: #{tpu_custom_call.1} parent=1 // pred_fallthru
      _
    %173 = vsyncpa [#allocation3], 1

</llo_original>
